<compile_context>
chip_gen: v7x
topology: tpu7x:2x2x1
jax: 0.10.0
libtpu: 0.0.40
codegen_flags: <defaults>
</compile_context>

<pallas_src>
import functools

import jax
import jax.numpy as jnp
from jax import lax
from jax.experimental import pallas as pl
from jax.experimental.pallas import tpu as pltpu


# ----------------------------- kernels --------------------------------------


def _pool_kernel(ids_ref, x_ref, sum_ref, cnt_ref, *, n_nodes, tile_n,
                 tiles_per_split):
    """Accumulate per-split segment sums (G, D) and counts (G, 1) over node tiles."""
    s = pl.program_id(0)          # split index ("parallel" axis -> megacore)
    t = pl.program_id(1)          # tile-within-split ("arbitrary" reduction axis)
    G = sum_ref.shape[0]

    # Zero the resident output accumulators at the first tile of this split.
    @pl.when(t == 0)
    def _():
        sum_ref[...] = jnp.zeros_like(sum_ref)
        cnt_ref[...] = jnp.zeros_like(cnt_ref)

    # Global row ids of this tile.  The index_map clamps out-of-range tile
    # indices to the last valid block, so rows >= n_nodes (tail rows and fully
    # duplicated/clamped tiles) must be masked out here.
    raw_tile = s * tiles_per_split + t
    rows = raw_tile * tile_n + lax.broadcasted_iota(jnp.int32, (tile_n, 1), 0)
    valid = rows < n_nodes                                        # (tile_n, 1)

    # Exact 0/1 one-hot in bf16 (built once per grid step; no inner loop).
    ids = ids_ref[...]                                            # (tile_n, 1) i32
    gids = lax.broadcasted_iota(jnp.int32, (tile_n, G), 1)        # (tile_n, G)
    onehot = ((ids == gids) & valid).astype(jnp.bfloat16)         # (tile_n, G)

    xb = x_ref[...].astype(jnp.bfloat16)                          # (tile_n, D)

    # pooled_sum[g, d] += sum_n onehot[n, g] * x[n, d]   (MXU, f32 accumulate)
    sum_ref[...] += lax.dot_general(
        onehot, xb, (((0,), (0,)), ((), ())),
        preferred_element_type=jnp.float32)

    # counts[g] += sum_n onehot[n, g]   (also on the MXU; no XLU sublane reduce)
    ones_col = jnp.ones((tile_n, 1), jnp.bfloat16)
    cnt_ref[...] += lax.dot_general(
        onehot, ones_col, (((0,), (0,)), ((), ())),
        preferred_element_type=jnp.float32)


def _finalize_kernel(sum_ref, cnt_ref, w1_ref, b1_ref, w2_ref, b2_ref, out_ref):
    """Combine per-split partials, normalize (mean pool), run the 2-layer MLP."""
    pooled_sum = jnp.sum(sum_ref[...], axis=0)                    # (G, D) f32
    counts = jnp.sum(cnt_ref[...], axis=0)                        # (G, 1) f32
    # Normalize AFTER the matmul: O(G*D) multiplies, reciprocal on the EUP slot.
    inv = pl.reciprocal(jnp.maximum(counts, 1.0), approx=True)    # empty graph -> 0 mean
    pooled = pooled_sum * inv                                     # (G, D)

    h = jnp.dot(pooled, w1_ref[...], preferred_element_type=jnp.float32) + b1_ref[...]
    h = jnp.maximum(h, 0.0)
    out = jnp.dot(h, w2_ref[...], preferred_element_type=jnp.float32) + b2_ref[...]
    out_ref[...] = out.astype(out_ref.dtype)


# ----------------------------- wrapper ---------------------------------------


def _round_up(v, m):
    return ((v + m - 1) // m) * m


def _choose_tile_n(n_nodes, dim_in, itemsize, splits):
    """Large multiple-of-256-ish tile, capped so the double-buffered working set fits VMEM."""
    per_split = pl.cdiv(n_nodes, splits)
    tile = min(1024, max(8, _round_up(per_split, 8)))
    # Double-buffered x tile + lane-padded (tile, 1) i32 id column must fit comfortably
    # (budget sized for v7x's smaller VMEM too).
    budget = 16 * 1024 * 1024
    while tile > 8 and 2 * tile * (dim_in * itemsize + 512) > budget:
        tile //= 2
    return max(8, _round_up(tile, 8))


def gnn_graph_head(x, batch_idx, y, params, *, tile_n=None, splits=2):
    """Pallas implementation of GNNGraphHead.forward -> (pred, label)."""
    N, D = x.shape
    G = int(params["num_graphs"])
    H = params["w1"].shape[1]
    dim_out = params["w2"].shape[1]

    ids = batch_idx.reshape(N, 1).astype(jnp.int32)

    if tile_n is None:
        tile_n = _choose_tile_n(N, D, x.dtype.itemsize, splits)
    num_tiles = pl.cdiv(N, tile_n)
    splits = max(1, min(int(splits), num_tiles))
    tiles_per_split = pl.cdiv(num_tiles, splits)

    # Index map over node tiles.  Clamp tile indices that fall past the end of
    # the array (possible when num_tiles % splits != 0); those tiles are fully
    # masked inside the kernel via the global-row-index test.
    def tile_map(s, t):
        return (jnp.minimum(s * tiles_per_split + t, num_tiles - 1), 0)

    # Explicit VMEM budget (double-buffered inputs + resident output blocks).
    x_bytes = 2 * tile_n * D * x.dtype.itemsize
    id_bytes = 2 * tile_n * 128 * 4              # (tile_n, 1) i32 pads to 128 lanes
    sum_bytes = 2 * _round_up(G, 8) * _round_up(D, 128) * 4
    cnt_bytes = 2 * _round_up(G, 8) * 128 * 4
    need = x_bytes + id_bytes + sum_bytes + cnt_bytes
    vmem_limit = min(max(int(1.5 * need) + (4 << 20), 16 << 20), 48 << 20)

    pool = pl.pallas_call(
        functools.partial(_pool_kernel, n_nodes=N, tile_n=tile_n,
                          tiles_per_split=tiles_per_split),
        out_shape=(
            jax.ShapeDtypeStruct((splits, G, D), jnp.float32),   # per-split pooled sums
            jax.ShapeDtypeStruct((splits, G, 1), jnp.float32),   # per-split counts
        ),
        grid=(splits, tiles_per_split),
        in_specs=[
            pl.BlockSpec((tile_n, 1), tile_map),                 # batch ids
            pl.BlockSpec((tile_n, D), tile_map),                 # node features
        ],
        out_specs=(
            pl.BlockSpec((None, G, D), lambda s, t: (s, 0, 0)),  # resident across t
            pl.BlockSpec((None, G, 1), lambda s, t: (s, 0, 0)),
        ),
        compiler_params=pltpu.CompilerParams(
            dimension_semantics=("parallel", "arbitrary"),
            vmem_limit_bytes=vmem_limit,
        ),
        cost_estimate=pl.CostEstimate(
            flops=2 * N * G * (D + 1),
            transcendentals=0,
            bytes_accessed=N * D * x.dtype.itemsize + N * 4
                           + splits * G * (D + 1) * 4,
        ),
    )
    partial_sum, partial_cnt = pool(ids, x)

    pred = pl.pallas_call(
        _finalize_kernel,
        out_shape=jax.ShapeDtypeStruct((G, dim_out), jnp.float32),
        in_specs=[pl.BlockSpec(memory_space=pltpu.MemorySpace.VMEM)] * 6,
        out_specs=pl.BlockSpec(memory_space=pltpu.MemorySpace.VMEM),
        cost_estimate=pl.CostEstimate(
            flops=2 * G * D * H + 2 * G * H * dim_out + splits * G * (D + 1),
            transcendentals=G,
            bytes_accessed=(splits * G * (D + 1) + D * H + H
                            + H * dim_out + dim_out + G * dim_out) * 4,
        ),
    )(partial_sum, partial_cnt, params["w1"], params["b1"],
      params["w2"], params["b2"])

    return pred, y


# ----------------------------- test harness ----------------------------------


def make_params(key, dim_in, hidden, dim_out, num_graphs):
    k1, k2, k3, k4 = jax.random.split(key, 4)
    w1 = jax.random.normal(k1, (dim_in, hidden), jnp.float32) * (1.0 / jnp.sqrt(dim_in))
    b1 = jax.random.normal(k2, (1, hidden), jnp.float32) * 0.01
    w2 = jax.random.normal(k3, (hidden, dim_out), jnp.float32) * (1.0 / jnp.sqrt(hidden))
    b2 = jax.random.normal(k4, (1, dim_out), jnp.float32) * 0.01
    return {"w1": w1, "b1": b1, "w2": w2, "b2": b2, "num_graphs": num_graphs}


def reference_forward(x, batch_idx, y, params):
    """Pure-JAX f32 reference (global_mean_pool + MLP)."""
    G = params["num_graphs"]
    seg_sum = jax.ops.segment_sum(x, batch_idx, num_segments=G)
    counts = jax.ops.segment_sum(jnp.ones((x.shape[0],), jnp.float32), batch_idx,
                                 num_segments=G)
    pooled = seg_sum / jnp.maximum(counts, 1.0)[:, None]
    h = jnp.maximum(pooled @ params["w1"] + params["b1"], 0.0)
    out = h @ params["w2"] + params["b2"]
    return out, y


if __name__ == "__main__":
    key = jax.random.PRNGKey(0)
    kx, kb, kp = jax.random.split(key, 3)

    N = 32          # total nodes across all graphs
    G = 4           # number of graphs in the batch
    dim_in = 32     # node feature dim (input to the head)
    hidden = 32     # cfg.gnn.dim_inner
    dim_out = 8     # prediction dim

    x = jax.random.normal(kx, (N, dim_in), jnp.float32)
    # Sorted graph assignment like PyG's batch vector: 8 nodes per graph.
    batch_idx = jnp.repeat(jnp.arange(G, dtype=jnp.int32), N // G)
    y = jax.random.randint(kb, (G,), 0, dim_out, dtype=jnp.int32)

    params = make_params(kp, dim_in, hidden, dim_out, G)

    pred, label = gnn_graph_head(x, batch_idx, y, params)
    pred = jax.block_until_ready(pred)

    ref_pred, _ = reference_forward(x, batch_idx, y, params)
    assert pred.shape == (G, dim_out)
    assert label.shape == (G,)
    # bf16 pooling matmul + approx reciprocal -> bf16-level tolerance vs f32 reference.
    assert jnp.allclose(pred, ref_pred, atol=2e-2, rtol=2e-2), "mismatch vs reference"

    print("KERNEL_OK")
</pallas_src>

<mosaic_0001>
module attributes {stable_mosaic.version = 11 : i64} {
  func.func @_pool_kernel(%arg0: i32, %arg1: i32, %arg2: memref<16x1xi32, #tpu.memory_space<vmem>>, %arg3: memref<16x32xf32, #tpu.memory_space<vmem>>, %arg4: memref<1x4x32xf32, #tpu.memory_space<vmem>>, %arg5: memref<1x4x1xf32, #tpu.memory_space<vmem>>) attributes {dimension_semantics = [#tpu.dimension_semantics<parallel>, #tpu.dimension_semantics<arbitrary>], iteration_bounds = array<i64: 2, 1>, scalar_prefetch = 0 : i64, scratch_operands = 0 : i64, tpu.core_type = #tpu.core_type<tc>, window_params = [{transform_indices = @transform_0, window_bounds = array<i64: 16, 1>}, {transform_indices = @transform_1, window_bounds = array<i64: 16, 32>}, {transform_indices = @transform_2, window_bounds = array<i64: 1, 4, 32>}, {transform_indices = @transform_3, window_bounds = array<i64: 1, 4, 1>}]} {
    %c0_i32 = arith.constant 0 : i32
    %0 = arith.cmpi eq, %arg1, %c0_i32 : i32
    %1 = arith.extui %0 : i1 to i32
    %c0_i32_0 = arith.constant 0 : i32
    %2 = arith.cmpi ne, %1, %c0_i32_0 : i32
    scf.if %2 {
      %cst_18 = arith.constant 0.000000e+00 : f32
      %37 = vector.broadcast %cst_18 : f32 to vector<4x32xf32>
      %c0_19 = arith.constant 0 : index
      %c0_20 = arith.constant 0 : index
      %c0_21 = arith.constant 0 : index
      %38 = vector.load %arg4[%c0_19, %c0_20, %c0_21] : memref<1x4x32xf32, #tpu.memory_space<vmem>>, vector<1x4x32xf32>
      %39 = vector.shape_cast %38 : vector<1x4x32xf32> to vector<4x32xf32>
      %40 = vector.shape_cast %37 : vector<4x32xf32> to vector<1x4x32xf32>
      tpu.vector_store %arg4[%c0_19, %c0_20, %c0_21], %40 {strides = array<i32>} : memref<1x4x32xf32, #tpu.memory_space<vmem>>, vector<1x4x32xf32>,
      %cst_22 = arith.constant 0.000000e+00 : f32
      %41 = vector.broadcast %cst_22 : f32 to vector<4x1xf32>
      %c0_23 = arith.constant 0 : index
      %c0_24 = arith.constant 0 : index
      %c0_25 = arith.constant 0 : index
      %42 = vector.load %arg5[%c0_23, %c0_24, %c0_25] : memref<1x4x1xf32, #tpu.memory_space<vmem>>, vector<1x4x1xf32>
      %43 = vector.shape_cast %42 : vector<1x4x1xf32> to vector<4x1xf32>
      %44 = vector.shape_cast %41 : vector<4x1xf32> to vector<1x4x1xf32>
      tpu.vector_store %arg5[%c0_23, %c0_24, %c0_25], %44 {strides = array<i32>} : memref<1x4x1xf32, #tpu.memory_space<vmem>>, vector<1x4x1xf32>,
    } else {
    }
    %c1_i32 = arith.constant 1 : i32
    %3 = arith.muli %arg0, %c1_i32 : i32
    %4 = arith.addi %3, %arg1 : i32
    %c16_i32 = arith.constant 16 : i32
    %5 = arith.muli %4, %c16_i32 : i32
    %6 = tpu.iota {dimensions = array<i32: 0>} : vector<16x1xi32>
    %7 = vector.broadcast %5 : i32 to vector<16x1xi32>
    %8 = arith.addi %7, %6 : vector<16x1xi32>
    %c32_i32 = arith.constant 32 : i32
    %9 = vector.broadcast %c32_i32 : i32 to vector<16x1xi32>
    %10 = arith.cmpi slt, %8, %9 : vector<16x1xi32>
    %c0 = arith.constant 0 : index
    %c0_1 = arith.constant 0 : index
    %11 = vector.load %arg2[%c0, %c0_1] : memref<16x1xi32, #tpu.memory_space<vmem>>, vector<16x1xi32>
    %12 = tpu.iota {dimensions = array<i32: 1>} : vector<16x4xi32>
    %13 = vector.broadcast %11 : vector<16x1xi32> to vector<16x4xi32>
    %14 = arith.cmpi eq, %13, %12 : vector<16x4xi32>
    %15 = vector.broadcast %10 : vector<16x1xi1> to vector<16x4xi1>
    %16 = arith.andi %14, %15 : vector<16x4xi1>
    %17 = arith.extui %16 : vector<16x4xi1> to vector<16x4xi32>
    %18 = arith.sitofp %17 : vector<16x4xi32> to vector<16x4xf32>
    %19 = arith.truncf %18 : vector<16x4xf32> to vector<16x4xbf16>
    %c0_2 = arith.constant 0 : index
    %c0_3 = arith.constant 0 : index
    %20 = vector.load %arg3[%c0_2, %c0_3] : memref<16x32xf32, #tpu.memory_space<vmem>>, vector<16x32xf32>
    %21 = arith.truncf %20 : vector<16x32xf32> to vector<16x32xbf16>
    %c0_4 = arith.constant 0 : index
    %c0_5 = arith.constant 0 : index
    %c0_6 = arith.constant 0 : index
    %22 = vector.load %arg4[%c0_4, %c0_5, %c0_6] : memref<1x4x32xf32, #tpu.memory_space<vmem>>, vector<1x4x32xf32>
    %23 = vector.shape_cast %22 : vector<1x4x32xf32> to vector<4x32xf32>
    %cst = arith.constant dense<0.000000e+00> : vector<4x32xf32>
    %24 = tpu.matmul %19, %21, %cst {dimension_numbers = #tpu.dot_dimension_numbers<[0], [0], [1], [1], [0, 1, 1, 1], [], []>} : vector<16x4xbf16>, vector<16x32xbf16>, vector<4x32xf32> -> vector<4x32xf32>
    %25 = arith.addf %23, %24 : vector<4x32xf32>
    %c0_7 = arith.constant 0 : index
    %c0_8 = arith.constant 0 : index
    %c0_9 = arith.constant 0 : index
    %26 = vector.load %arg4[%c0_7, %c0_8, %c0_9] : memref<1x4x32xf32, #tpu.memory_space<vmem>>, vector<1x4x32xf32>
    %27 = vector.shape_cast %26 : vector<1x4x32xf32> to vector<4x32xf32>
    %28 = vector.shape_cast %25 : vector<4x32xf32> to vector<1x4x32xf32>
    tpu.vector_store %arg4[%c0_7, %c0_8, %c0_9], %28 {strides = array<i32>} : memref<1x4x32xf32, #tpu.memory_space<vmem>>, vector<1x4x32xf32>,
    %cst_10 = arith.constant 1.000000e+00 : bf16
    %29 = vector.broadcast %cst_10 : bf16 to vector<16x1xbf16>
    %c0_11 = arith.constant 0 : index
    %c0_12 = arith.constant 0 : index
    %c0_13 = arith.constant 0 : index
    %30 = vector.load %arg5[%c0_11, %c0_12, %c0_13] : memref<1x4x1xf32, #tpu.memory_space<vmem>>, vector<1x4x1xf32>
    %31 = vector.shape_cast %30 : vector<1x4x1xf32> to vector<4x1xf32>
    %cst_14 = arith.constant dense<0.000000e+00> : vector<4x1xf32>
    %32 = tpu.matmul %19, %29, %cst_14 {dimension_numbers = #tpu.dot_dimension_numbers<[0], [0], [1], [1], [0, 1, 1, 1], [], []>} : vector<16x4xbf16>, vector<16x1xbf16>, vector<4x1xf32> -> vector<4x1xf32>
    %33 = arith.addf %31, %32 : vector<4x1xf32>
    %c0_15 = arith.constant 0 : index
    %c0_16 = arith.constant 0 : index
    %c0_17 = arith.constant 0 : index
    %34 = vector.load %arg5[%c0_15, %c0_16, %c0_17] : memref<1x4x1xf32, #tpu.memory_space<vmem>>, vector<1x4x1xf32>
    %35 = vector.shape_cast %34 : vector<1x4x1xf32> to vector<4x1xf32>
    %36 = vector.shape_cast %33 : vector<4x1xf32> to vector<1x4x1xf32>
    tpu.vector_store %arg5[%c0_15, %c0_16, %c0_17], %36 {strides = array<i32>} : memref<1x4x1xf32, #tpu.memory_space<vmem>>, vector<1x4x1xf32>,
    return
  }
  func.func @transform_0(%arg0: i32, %arg1: i32) -> (i32, i32) {
    %c1_i32 = arith.constant 1 : i32
    %0 = arith.muli %arg0, %c1_i32 : i32
    %1 = arith.addi %0, %arg1 : i32
    %c1_i32_0 = arith.constant 1 : i32
    %2 = arith.minsi %1, %c1_i32_0 : i32
    %c0_i32 = arith.constant 0 : i32
    %c0_i32_1 = arith.constant 0 : i32
    return %2, %c0_i32 : i32, i32
  }
  func.func @transform_1(%arg0: i32, %arg1: i32) -> (i32, i32) {
    %c1_i32 = arith.constant 1 : i32
    %0 = arith.muli %arg0, %c1_i32 : i32
    %1 = arith.addi %0, %arg1 : i32
    %c1_i32_0 = arith.constant 1 : i32
    %2 = arith.minsi %1, %c1_i32_0 : i32
    %c0_i32 = arith.constant 0 : i32
    %c0_i32_1 = arith.constant 0 : i32
    return %2, %c0_i32 : i32, i32
  }
  func.func @transform_2(%arg0: i32, %arg1: i32) -> (i32, i32, i32) {
    %c0_i32 = arith.constant 0 : i32
    %c0_i32_0 = arith.constant 0 : i32
    %c0_i32_1 = arith.constant 0 : i32
    return %arg0, %c0_i32, %c0_i32_0 : i32, i32, i32
  }
  func.func @transform_3(%arg0: i32, %arg1: i32) -> (i32, i32, i32) {
    %c0_i32 = arith.constant 0 : i32
    %c0_i32_0 = arith.constant 0 : i32
    %c0_i32_1 = arith.constant 0 : i32
    return %arg0, %c0_i32, %c0_i32_0 : i32, i32, i32
  }
}

</mosaic_0001>

<llo_original>
// kernel: tpu_custom_call.1
$region0: #{tpu_custom_call.1}
  #allocation0 [shape = 'u32[]', space=smem, size = 0x4, offset = 0x4, fixed_abs, tag = 'smem constant byte address 0x4 - core index']
  #allocation1 [shape = 'u32[144,128]{1,0:T(1,128)}', space=vmem, size = 0x12000, scoped, tag = 'internal scratch']
  %s0 = inlined_call_operand.vmem [shape: s32[32,1], index: 0, kind: input, shape index: {}]
  %s1 = inlined_call_operand.vmem [shape: f32[32,32], index: 1, kind: input, shape index: {}]
  %s2 = inlined_call_operand.hbm [shape: f32[2,4,32], index: 2, kind: output, shape index: {0}]
  %s3 = inlined_call_operand.vmem [shape: f32[2,4,1], index: 3, kind: output, shape index: {1}]
  %4 = xla_tuple %s2, %s3
  %s5 = sld [smem:[#allocation0]]
  $region53: #{tpu_custom_call.1} parent=0
    _
  %s7 = ssub.s32 1, %s5
  %s8 = scalar_select 0, %s7, %s5
  $region1: #{tpu_custom_call.1} parent=0
    #allocation2 [shape = 'u8[4096]{0}', space=vmem, size = 0x1000, scoped, tag = 'output window, operand 0']
    #allocation3 [shape = 's32[2]{0}', space=sflag, size = 0x8, scoped, tag = 'scoped memory for tpu_custom_call.1']
    %9 = vsyncpa [#allocation3], 0
    %s10 = scalar_lea.sflag [#allocation3], 1
    %11 = vsyncpa %s10, 0
    loop: start=0, step=1, limit=4
    $region2: #{tpu_custom_call.1} parent=1 // loop_pre_header
      _
    $region3: #{tpu_custom_call.1} parent=1 // loop_header
      %s13 = sphi 0, %s17
      %p14 = scmp.ge.s32.totalorder %s13, 4
      %s20 = sphi 0, %s32
      %s21 = sphi 0, %s28
      %s22 = sphi 0, %s20
      %s23 = sphi 0, %s21
      %s24 = sphi 0, %s22
      %s25 = sphi 0, %s23
      %s41 = sphi 0, %s43
      %s44 = sphi 0, %s41
      %s45 = sphi 0, %s44
      %s61 = sphi 0, %s45
      %s73 = sphi 0, %s75
      %s76 = sphi 0, %s73
      %s77 = sphi 0, %s76
      %s93 = sphi 0, %s77
      %s99 = sphi 0, %s101
      %s102 = sphi 0, %s99
      %s103 = sphi 0, %s102
      %s119 = sphi 0, %s103
      %s125 = sphi 0, %s127
      %s128 = sphi 0, %s125
      %s129 = sphi 0, %s128
      %s145 = sphi 0, %s129
    $region4: #{tpu_custom_call.1} parent=1 // loop_header_branch
      %16 = sbr.rel (%p14) target = $region8
    $region5: #{tpu_custom_call.1} parent=1 // loop_body
      %s18 = ssub.s32 %s13, 1
      %s19 = ssub.s32 %s13, 2
      %s26 = sadd.s32 1, %s21
      %p27 = scmp.ge.s32.totalorder %s26, 1
      %s28 = scalar_select %p27, 0, %s26
      %s29 = sadd.s32 1, %s20
      %s30 = scalar_select %p27, %s29, %s20
      %p31 = scmp.ge.s32.totalorder %s30, 2
      %s32 = scalar_select %p31, 0, %s30
      %s33 = sadd.s32 %s20, %s21
      %p34 = scmp.lt.s32.totalorder %s33, 1
      %s35 = scalar_select %p34, %s33, 1
      %s36 = sadd.s32 %s32, %s28
      %p37 = scmp.lt.s32.totalorder %s36, 1
      %s38 = scalar_select %p37, %s36, 1
      %s39 = ssub.s32 %s35, %s38
      %p40 = scmp.eq.s32.totalorder %s39, 0
      %s42 = sadd.s32 %s41, 1
      %s43 = scalar_select %p40, %s41, %s42
      %p46 = pneg %p40
      %p47 = scmp.eq.s32.totalorder %s13, 1
      %p48 = por %p46, %p47
      %p49 = scmp.ne.s32.totalorder %s41, %s44
      %p50 = scmp.eq.s32.totalorder %s13, 0
      %p51 = por %p49, %p50
      %p52 = scmp.ne.s32.totalorder %s41, %s44
      %p53 = scmp.eq.s32.totalorder %s18, 1
      %p54 = por %p52, %p53
      %p55 = scmp.ne.s32.totalorder %s44, %s45
      %p56 = scmp.eq.s32.totalorder %s18, 0
      %p57 = por %p55, %p56
      %p58 = scmp.ne.s32.totalorder %s44, %s45
      %p59 = scmp.eq.s32.totalorder %s19, 1
      %p60 = por %p58, %p59
      %p62 = scmp.ne.s32.totalorder %s45, %s61
      %p63 = scmp.eq.s32.totalorder %s19, 0
      %p64 = por %p62, %p63
      %s65 = sadd.s32 %s20, %s21
      %p66 = scmp.lt.s32.totalorder %s65, 1
      %s67 = scalar_select %p66, %s65, 1
      %s68 = sadd.s32 %s32, %s28
      %p69 = scmp.lt.s32.totalorder %s68, 1
      %s70 = scalar_select %p69, %s68, 1
      %s71 = ssub.s32 %s67, %s70
      %p72 = scmp.eq.s32.totalorder %s71, 0
      %s74 = sadd.s32 %s73, 1
      %s75 = scalar_select %p72, %s73, %s74
      %p78 = pneg %p72
      %p79 = scmp.eq.s32.totalorder %s13, 1
      %p80 = por %p78, %p79
      %p81 = scmp.ne.s32.totalorder %s73, %s76
      %p82 = scmp.eq.s32.totalorder %s13, 0
      %p83 = por %p81, %p82
      %p84 = scmp.ne.s32.totalorder %s73, %s76
      %p85 = scmp.eq.s32.totalorder %s18, 1
      %p86 = por %p84, %p85
      %p87 = scmp.ne.s32.totalorder %s76, %s77
      %p88 = scmp.eq.s32.totalorder %s18, 0
      %p89 = por %p87, %p88
      %p90 = scmp.ne.s32.totalorder %s76, %s77
      %p91 = scmp.eq.s32.totalorder %s19, 1
      %p92 = por %p90, %p91
      %p94 = scmp.ne.s32.totalorder %s77, %s93
      %p95 = scmp.eq.s32.totalorder %s19, 0
      %p96 = por %p94, %p95
      %s97 = ssub.s32 %s20, %s32
      %p98 = scmp.eq.s32.totalorder %s97, 0
      %s100 = sadd.s32 %s99, 1
      %s101 = scalar_select %p98, %s99, %s100
      %p104 = pneg %p98
      %p105 = scmp.eq.s32.totalorder %s13, 1
      %p106 = por %p104, %p105
      %p107 = scmp.ne.s32.totalorder %s99, %s102
      %p108 = scmp.eq.s32.totalorder %s13, 0
      %p109 = por %p107, %p108
      %p110 = scmp.ne.s32.totalorder %s99, %s102
      %p111 = scmp.eq.s32.totalorder %s18, 1
      %p112 = por %p110, %p111
      %p113 = scmp.ne.s32.totalorder %s102, %s103
      %p114 = scmp.eq.s32.totalorder %s18, 0
      %p115 = por %p113, %p114
      %p116 = scmp.ne.s32.totalorder %s102, %s103
      %p117 = scmp.eq.s32.totalorder %s19, 1
      %p118 = por %p116, %p117
      %p120 = scmp.ne.s32.totalorder %s103, %s119
      %p121 = scmp.eq.s32.totalorder %s19, 0
      %p122 = por %p120, %p121
      %s123 = ssub.s32 %s20, %s32
      %p124 = scmp.eq.s32.totalorder %s123, 0
      %s126 = sadd.s32 %s125, 1
      %s127 = scalar_select %p124, %s125, %s126
      %p130 = pneg %p124
      %p131 = scmp.eq.s32.totalorder %s13, 1
      %p132 = por %p130, %p131
      %p133 = scmp.ne.s32.totalorder %s125, %s128
      %p134 = scmp.eq.s32.totalorder %s13, 0
      %p135 = por %p133, %p134
      %p136 = scmp.ne.s32.totalorder %s125, %s128
      %p137 = scmp.eq.s32.totalorder %s18, 1
      %p138 = por %p136, %p137
      %p139 = scmp.ne.s32.totalorder %s128, %s129
      %p140 = scmp.eq.s32.totalorder %s18, 0
      %p141 = por %p139, %p140
      %p142 = scmp.ne.s32.totalorder %s128, %s129
      %p143 = scmp.eq.s32.totalorder %s19, 1
      %p144 = por %p142, %p143
      %p146 = scmp.ne.s32.totalorder %s129, %s145
      %p147 = scmp.eq.s32.totalorder %s19, 0
      %p148 = por %p146, %p147
      %p149 = scmp.le.s32.totalorder 1, %s13
      %p150 = scmp.lt.s32.totalorder %s13, 3
      %p151 = pnand %p149, %p150
      %p152 = pneg %p151
      // Predicated region
      $region9: #{tpu_custom_call.1} parent=5 // pred_check
        _
      $region10: #{tpu_custom_call.1} parent=5 // pred_check_branch
        %154 = sbr.rel (%p151) target = $region12
      $region11: #{tpu_custom_call.1} parent=5 // pred_region
        %s155 = ssub.s32 %s13, 1
      $region12: #{tpu_custom_call.1} parent=5 // pred_fallthru
        _
      %p156 = scmp.lt.s32.totalorder %s13, 2
      // Predicated region
      $region13: #{tpu_custom_call.1} parent=5 // pred_check
        %p157 = pneg %p156
      $region14: #{tpu_custom_call.1} parent=5 // pred_check_branch
        %159 = sbr.rel (%p157) target = $region16
      $region15: #{tpu_custom_call.1} parent=5 // pred_region
        // Predicated region
        $region17: #{tpu_custom_call.1} parent=15 // pred_check
          %p160 = pneg %p51
        $region18: #{tpu_custom_call.1} parent=15 // pred_check_branch
          %162 = sbr.rel (%p160) target = $region20
        $region19: #{tpu_custom_call.1} parent=15 // pred_region
          %s163 = sadd.s32 %s20, %s21
          %p164 = scmp.lt.s32.totalorder %s163, 1
          %s165 = scalar_select %p164, %s163, 1
          %s166 = smul.u32 2, %s165
          %p167 = scmp.lt.s32.totalorder %s166, 3
          %s168 = scalar_select %p167, %s166, 3
          %s169 = smul.addr %s168, 8
          %s170 = scalar_lea.vmem %s0, %s169
          %s171 = sadd.s32 %s20, %s21
          %p172 = scmp.lt.s32.totalorder %s171, 1
          %s173 = scalar_select %p172, %s171, 1
          %s174 = smul.u32 2, %s173
        $region20: #{tpu_custom_call.1} parent=15 // pred_fallthru
          _
        // Predicated region
        $region21: #{tpu_custom_call.1} parent=15 // pred_check
          %p175 = pneg %p83
        $region22: #{tpu_custom_call.1} parent=15 // pred_check_branch
          %177 = sbr.rel (%p175) target = $region24
        $region23: #{tpu_custom_call.1} parent=15 // pred_region
          %s178 = sadd.s32 %s20, %s21
          %p179 = scmp.lt.s32.totalorder %s178, 1
          %s180 = scalar_select %p179, %s178, 1
          %s181 = smul.u32 2, %s180
          %p182 = scmp.lt.s32.totalorder %s181, 3
          %s183 = scalar_select %p182, %s181, 3
          %s184 = smul.addr %s183, 8
          %s185 = scalar_lea.vmem %s1, %s184
          %s186 = sadd.s32 %s20, %s21
          %p187 = scmp.lt.s32.totalorder %s186, 1
          %s188 = scalar_select %p187, %s186, 1
          %s189 = smul.u32 2, %s188
        $region24: #{tpu_custom_call.1} parent=15 // pred_fallthru
          _
      $region16: #{tpu_custom_call.1} parent=5 // pred_fallthru
        _
      %p190 = scmp.le.s32.totalorder 1, %s13
      %p191 = scmp.lt.s32.totalorder %s13, 3
      %p192 = pnand %p190, %p191
      %p193 = pneg %p192
      // Predicated region
      $region25: #{tpu_custom_call.1} parent=5 // pred_check
        _
      $region26: #{tpu_custom_call.1} parent=5 // pred_check_branch
        %195 = sbr.rel (%p192) target = $region28
      $region27: #{tpu_custom_call.1} parent=5 // pred_region
        %s196 = ssub.s32 %s13, 1
        %s197 = sadd.s32 %s22, %s23
        %p198 = scmp.lt.s32.totalorder %s197, 1
        %s199 = scalar_select %p198, %s197, 1
        %s200 = smul.u32 2, %s199
        %p201 = scmp.lt.s32.totalorder %s200, 3
        %s202 = scalar_select %p201, %s200, 3
        %s203 = smul.addr %s202, 8
        %s204 = scalar_lea.vmem %s0, %s203
        %p205 = pneg %p57
        %p206 = pneg %p54
        %s207 = sadd.s32 %s22, %s23
        %p208 = scmp.lt.s32.totalorder %s207, 1
        %s209 = scalar_select %p208, %s207, 1
        %s210 = smul.u32 2, %s209
        %p211 = scmp.lt.s32.totalorder %s210, 3
        %s212 = scalar_select %p211, %s210, 3
        %s213 = smul.addr %s212, 8
        %s214 = scalar_lea.vmem %s1, %s213
        %p215 = pneg %p89
        %p216 = pneg %p86
        %p217 = pneg %p115
        %p218 = pneg %p112
        %s219 = sand.u32 %s102, 1
        %s220 = scalar_lea.sflag [#allocation3], %s219
        %s221 = sand.u32 %s102, 1
        %s222 = smul.addr %s221, 4
        %s223 = scalar_lea.vmem [#allocation2], %s222
        %p224 = pneg %p141
        %p225 = pneg %p138
        %p226 = scmp.lt.s32.totalorder %s22, 1
        %s227 = scalar_select %p226, %s22, 1
        %s228 = smul.addr %s227, 4
        %s229 = scalar_lea.vmem %s3, %s228
        %s230 = sadd.s32 %s22, %s23
        %p231 = scmp.lt.s32.totalorder %s230, 1
        %s232 = scalar_select %p231, %s230, 1
        %s233 = smul.u32 2, %s232
        %p234 = scmp.lt.s32.totalorder %s233, 3
        %s235 = scalar_select %p234, %s233, 3
        %s236 = smul.addr %s235, 8
        %s237 = scalar_lea.vmem %s0, %s236
        %s238 = sadd.s32 %s22, %s23
        %p239 = scmp.lt.s32.totalorder %s238, 1
        %s240 = scalar_select %p239, %s238, 1
        %s241 = smul.u32 2, %s240
        %s242 = sadd.s32 %s22, %s23
        %p243 = scmp.lt.s32.totalorder %s242, 1
        %s244 = scalar_select %p243, %s242, 1
        %s245 = smul.u32 2, %s244
        %p246 = scmp.lt.s32.totalorder %s245, 3
        %s247 = scalar_select %p246, %s245, 3
        %s248 = smul.addr %s247, 8
        %s249 = scalar_lea.vmem %s1, %s248
        %s250 = sadd.s32 %s22, %s23
        %p251 = scmp.lt.s32.totalorder %s250, 1
        %s252 = scalar_select %p251, %s250, 1
        %s253 = smul.u32 2, %s252
        %p254 = scmp.lt.s32.totalorder %s22, 1
        %s255 = scalar_select %p254, %s22, 1
        %s256 = smul.addr %s255, 4
        %s257 = scalar_lea.vmem %s3, %s256
        %p260 = scmp.eq.s32.totalorder %s23, 0
        // Predicated region
        $region29: #{tpu_custom_call.1} parent=27 // pred_check
          %p261 = pneg %p260
        $region30: #{tpu_custom_call.1} parent=27 // pred_check_branch
          %263 = sbr.rel (%p261) target = $region32
        $region31: #{tpu_custom_call.1} parent=27 // pred_region
          %vm264 = vcmask 257024
          %265 = vst.msk [vmem:[%s223] sm:$0xf] %vm264, 0.0
          %vm266 = vcmask 3072
          %267 = vst.msk [vmem:[%s257] sm:$0xf] %vm266, 0.0
        $region32: #{tpu_custom_call.1} parent=27 // pred_fallthru
          _
        %s268 = sadd.s32 %s22, %s23
        %s269 = smul.u32 %s268, 16
        %v270 = vlaneseq
        %v271 = vshrl.u32 %v270, 7
        %v272 = vadd.s32 %v271, 8
        %v273 = vstv %s269
        %v274 = vadd.s32 %v273, %v271
        %v275 = vadd.s32 %v273, %v272
        %vm276 = vcmp.lt.s32.totalorder %v274, 32
        %vm277 = vcmp.lt.s32.totalorder %v275, 32
        %v278 = vld [vmem:[%s237] sm:$0xff]
        %v279 = vld [vmem:[%s237 + $0x8] sm:$0xff]
        %v280 = vlaneseq
        %v281 = vand.u32 %v280, 127
        %282 = vset.pattern.permute.xlu0 0
        %283 = vperm.xlu0 %282, %v278
        %v284 = vpop.permute.xlu0 %283
        %285 = vset.pattern.permute.xlu0 0
        %286 = vperm.xlu0 %285, %v279
        %v287 = vpop.permute.xlu0 %286
        %vm288 = vcmp.eq.s32.totalorder %v284, %v281
        %vm289 = vcmp.eq.s32.totalorder %v287, %v281
        %v290 = vsel %vm276, 1, 0
        %v291 = vsel %vm277, 1, 0
        %vm292 = vcmp.eq.s32.totalorder %v290, 1
        %vm293 = vcmp.eq.s32.totalorder %v291, 1
        %vm294 = vmand %vm288, %vm292
        %vm295 = vmand %vm289, %vm293
        %v296 = vsel %vm294, 1, 0
        %v297 = vsel %vm295, 1, 0
        %v298 = vcvt.s32.f32 %v296
        %v299 = vcvt.s32.f32 %v297
        %v300 = vpack.c.bf16 %v299, %v298
        %v301 = vld [vmem:[%s249] sm:$0xff]
        %v302 = vld [vmem:[%s249 + $0x8] sm:$0xff]
        %v303 = vpack.c.bf16 %v302, %v301
        %v304 = vld [vmem:[%s223] sm:$0xf]
        %305 = vxpose.xlu0.c.b16.start [1/8] %v300, 128
        %306 = vxpose.xlu0.c.b16.cont [2/8] 0, 128
        %307 = vxpose.xlu0.c.b16.cont [3/8] 0, 128
        %308 = vxpose.xlu0.c.b16.cont [4/8] 0, 128
        %309 = vxpose.xlu0.c.b16.cont [5/8] 0, 128
        %310 = vxpose.xlu0.c.b16.cont [6/8] 0, 128
        %311 = vxpose.xlu0.c.b16.cont [7/8] 0, 128
        %312 = vxpose.xlu0.c.b16.end [8/8] 0, 128
        %v313 = vpop.trf.xlu0
        %v314 = vpop.trf.xlu0
        %v315 = vpop.trf.xlu0
        %v316 = vpop.trf.xlu0
        %v317 = vpop.trf.xlu0
        %v318 = vpop.trf.xlu0
        %v319 = vpop.trf.xlu0
        %v320 = vpop.trf.xlu0
        %vm321 = vcmask 130048
        %v323 = vsel %vm321, %v313, 0
        %325 = vmatprep.subr.bf16.mxu0 0
        %326 = vmatpush1.bf16.msra.mxu0 %v303
        %327 = vmatprep.subr.bf16.mxu0 0
        %328 = vmatpush1.bf16.msra.mxu0 0
        %329 = vmatprep.subr.bf16.mxu0 0
        %330 = vmatpush1.bf16.msra.mxu0 0
        %331 = vmatprep.subr.bf16.mxu0 0
        %332 = vmatpush1.bf16.msra.mxu0 0
        %333 = vmatprep.subr.bf16.mxu0 0
        %334 = vmatpush1.bf16.msra.mxu0 0
        %335 = vmatprep.subr.bf16.mxu0 0
        %336 = vmatpush1.bf16.msra.mxu0 0
        %337 = vmatprep.subr.bf16.mxu0 0
        %338 = vmatpush1.bf16.msra.mxu0 0
        %339 = vmatprep.subr.bf16.mxu0 0
        %340 = vmatpush1.bf16.msra.mxu0 0
        %341 = vmatprep.subr.bf16.mxu0 0
        %342 = vmatpush1.bf16.msra.mxu0 0
        %343 = vmatprep.subr.bf16.mxu0 0
        %344 = vmatpush1.bf16.msra.mxu0 0
        %345 = vmatprep.subr.bf16.mxu0 0
        %346 = vmatpush1.bf16.msra.mxu0 0
        %347 = vmatprep.subr.bf16.mxu0 0
        %348 = vmatpush1.bf16.msra.mxu0 0
        %349 = vmatprep.subr.bf16.mxu0 0
        %350 = vmatpush1.bf16.msra.mxu0 0
        %351 = vmatprep.subr.bf16.mxu0 0
        %352 = vmatpush1.bf16.msra.mxu0 0
        %353 = vmatprep.subr.bf16.mxu0 0
        %354 = vmatpush1.bf16.msra.mxu0 0
        %355 = vmatprep.subr.bf16.mxu0 0
        %356 = vmatpush1.bf16.msra.mxu0 0
        %357 = vmatprep.mubr.bf16.mxu0 0
        %358 = vmatmul.mubr.bf16.gmra.mrb[0].mxu0 %v323
        %v359 = vpop.f32.mrb[0].mxu0
        %v360 = vadd.f32 0.0, %v359
        %v361 = vpop.f32.mrb[0].mxu0
        %v362 = vpop.f32.mrb[0].mxu0
        %v363 = vpop.f32.mrb[0].mxu0
        %364 = vdwg.mxu0
        %v365 = vadd.f32 %v304, %v360
        %vm366 = vcmask 257024
        %367 = vst.msk [vmem:[%s223] sm:$0xf] %vm366, %v365
        %v368 = vld [vmem:[%s257] sm:$0xf]
        %369 = vmatprep.subr.bf16.mxu0 0
        %370 = vmatpush1.bf16.msra.mxu0 1065369472
        %371 = vmatprep.subr.bf16.mxu0 0
        %372 = vmatpush1.bf16.msra.mxu0 0
        %373 = vmatprep.subr.bf16.mxu0 0
        %374 = vmatpush1.bf16.msra.mxu0 0
        %375 = vmatprep.subr.bf16.mxu0 0
        %376 = vmatpush1.bf16.msra.mxu0 0
        %377 = vmatprep.subr.bf16.mxu0 0
        %378 = vmatpush1.bf16.msra.mxu0 0
        %379 = vmatprep.subr.bf16.mxu0 0
        %380 = vmatpush1.bf16.msra.mxu0 0
        %381 = vmatprep.subr.bf16.mxu0 0
        %382 = vmatpush1.bf16.msra.mxu0 0
        %383 = vmatprep.subr.bf16.mxu0 0
        %384 = vmatpush1.bf16.msra.mxu0 0
        %385 = vmatprep.subr.bf16.mxu0 0
        %386 = vmatpush1.bf16.msra.mxu0 0
        %387 = vmatprep.subr.bf16.mxu0 0
        %388 = vmatpush1.bf16.msra.mxu0 0
        %389 = vmatprep.subr.bf16.mxu0 0
        %390 = vmatpush1.bf16.msra.mxu0 0
        %391 = vmatprep.subr.bf16.mxu0 0
        %392 = vmatpush1.bf16.msra.mxu0 0
        %393 = vmatprep.subr.bf16.mxu0 0
        %394 = vmatpush1.bf16.msra.mxu0 0
        %395 = vmatprep.subr.bf16.mxu0 0
        %396 = vmatpush1.bf16.msra.mxu0 0
        %397 = vmatprep.subr.bf16.mxu0 0
        %398 = vmatpush1.bf16.msra.mxu0 0
        %399 = vmatprep.subr.bf16.mxu0 0
        %400 = vmatpush1.bf16.msra.mxu0 0
        %401 = vmatprep.mubr.bf16.mxu0 0
        %402 = vmatmul.mubr.bf16.gmra.mrb[0].mxu0 %v323
        %v403 = vpop.f32.mrb[0].mxu0
        %v404 = vadd.f32 0.0, %v403
        %v405 = vpop.f32.mrb[0].mxu0
        %v406 = vpop.f32.mrb[0].mxu0
        %v407 = vpop.f32.mrb[0].mxu0
        %408 = vdwg.mxu0
        %v409 = vadd.f32 %v368, %v404
        %vm410 = vcmask 3072
        %411 = vst.msk [vmem:[%s257] sm:$0xf] %vm410, %v409
        %s412 = sand.u32 %s102, 1
        %s413 = scalar_lea.sflag [#allocation3], %s412
        %s414 = sand.u32 %s102, 1
        %s415 = smul.addr %s414, 4
        %s416 = scalar_lea.vmem [#allocation2], %s415
        %p417 = scmp.lt.s32.totalorder %s22, 1
        %s418 = scalar_select %p417, %s22, 1
        %s419 = smul.addr %s418, 4
        %s420 = scalar_lea.vmem %s3, %s419
        // Predicated region
        $region33: #{tpu_custom_call.1} parent=27 // pred_check
          %p421 = pneg %p112
        $region34: #{tpu_custom_call.1} parent=27 // pred_check_branch
          %423 = sbr.rel (%p421) target = $region36
        $region35: #{tpu_custom_call.1} parent=27 // pred_region
          %s425 = ssub.s32 64, 64
          %426 = vsyncadd %s413, %s425
          %s427 = smul.addr %s22, 64
          %s428 = scalar_lea.hbm %s2, %s427
          %s430 = sshll.u32 %s416, 4
          %s431 = int_to_ptr.vmem [resolvable:$true] %s430
          %433 = dma.vmem_to_hbm [thread:$0]  %s431, 64, %s428, %s413
        $region36: #{tpu_custom_call.1} parent=27 // pred_fallthru
          _
        // Predicated region
        $region37: #{tpu_custom_call.1} parent=27 // pred_check
          %p434 = pneg %p138
        $region38: #{tpu_custom_call.1} parent=27 // pred_check_branch
          %436 = sbr.rel (%p434) target = $region40
        $region39: #{tpu_custom_call.1} parent=27 // pred_region
          _
        $region40: #{tpu_custom_call.1} parent=27 // pred_fallthru
          _
      $region28: #{tpu_custom_call.1} parent=5 // pred_fallthru
        _
      %p437 = scmp.le.s32.totalorder 2, %s13
      // Predicated region
      $region41: #{tpu_custom_call.1} parent=5 // pred_check
        %p438 = pneg %p437
      $region42: #{tpu_custom_call.1} parent=5 // pred_check_branch
        %440 = sbr.rel (%p438) target = $region44
      $region43: #{tpu_custom_call.1} parent=5 // pred_region
        %s441 = ssub.s32 %s13, 2
        // Predicated region
        $region45: #{tpu_custom_call.1} parent=43 // pred_check
          %p442 = pneg %p118
        $region46: #{tpu_custom_call.1} parent=43 // pred_check_branch
          %444 = sbr.rel (%p442) target = $region48
        $region47: #{tpu_custom_call.1} parent=43 // pred_region
          %s445 = sand.u32 %s103, 1
          %s446 = scalar_lea.sflag [#allocation3], %s445
          %s447 = sand.u32 %s103, 1
          %s448 = smul.addr %s447, 4
          %s449 = scalar_lea.vmem [#allocation2], %s448
          %450 = dma.done %s446, 64
        $region48: #{tpu_custom_call.1} parent=43 // pred_fallthru
          _
        // Predicated region
        $region49: #{tpu_custom_call.1} parent=43 // pred_check
          %p451 = pneg %p144
        $region50: #{tpu_custom_call.1} parent=43 // pred_check_branch
          %453 = sbr.rel (%p451) target = $region52
        $region51: #{tpu_custom_call.1} parent=43 // pred_region
          %p454 = scmp.lt.s32.totalorder %s24, 1
          %s455 = scalar_select %p454, %s24, 1
          %s456 = smul.addr %s455, 4
          %s457 = scalar_lea.vmem %s3, %s456
        $region52: #{tpu_custom_call.1} parent=43 // pred_fallthru
          _
      $region44: #{tpu_custom_call.1} parent=5 // pred_fallthru
        _
    $region6: #{tpu_custom_call.1} parent=1 // loop_footer
      %s17 = sadd.s32 1, %s13
    $region7: #{tpu_custom_call.1} parent=1 // loop_footer_branch
      %12 = sbr.rel target = $region3
    $region8: #{tpu_custom_call.1} parent=1 // loop_exit
      _
    %458 = vsyncpa [#allocation3], 1
    %s459 = scalar_lea.sflag [#allocation3], 1
    %460 = vsyncpa %s459, 1

</llo_original>
